<compile_context>
chip_gen: v7x
topology: tpu7x:2x2x1
jax: 0.10.0
libtpu: 0.0.40
codegen_flags: <defaults>
</compile_context>

<pallas_src>
import functools

import jax
import jax.numpy as jnp
from jax.experimental import pallas as pl
from jax.experimental.pallas import tpu as pltpu


def _round_up(v, m):
    return ((v + m - 1) // m) * m


def _ring_conv_kernel(b_ref, p_ref, w1_ref, b1_ref, w2_ref, b2_ref,
                      y1_ref, y2_ref):
    """Per-sample body: two lane-dense MXU matmuls (+ bias) for the ring."""
    # Fused 1x1 conv over all boundary rows/cols: (C, C) @ (C, L_pad).
    y1 = jnp.dot(w1_ref[...], b_ref[0],
                 preferred_element_type=jnp.float32) + b1_ref[...]
    y1_ref[0] = y1.astype(y1_ref.dtype)
    # Corner 2x2 / stride-2 conv via im2col: (C, 4C) @ (4C, Q_pad).
    y2 = jnp.dot(w2_ref[...], p_ref[0],
                 preferred_element_type=jnp.float32) + b2_ref[...]
    y2_ref[0] = y2.astype(y2_ref.dtype)


def _corner_patches(x, r0, c0, s):
    """im2col for one 2s x 2s corner -> (N, 4C, s*s); row index = (2i+j)*C + c."""
    N, C = x.shape[0], x.shape[1]
    patch = x[:, :, r0:r0 + 2 * s, c0:c0 + 2 * s]                 # (N, C, 2s, 2s)
    taps = jnp.stack([patch[:, :, i::2, j::2]                     # (N, C, s, s)
                      for i in range(2) for j in range(2)], axis=1)
    return taps.reshape(N, 4 * C, s * s)


@functools.partial(jax.jit, static_argnames=("stride",))
def learning_padding_by_convolution(x, w1, b1, w2, b2, stride=1):
    """x: (N,C,H,W); w1: (C,C); b1: (C,); w2: (C,C,2,2); b2: (C,).
    Returns (N, C, H+2s, W+2s), dtype == x.dtype."""
    s = int(stride)
    N, C, H, W = x.shape
    assert H >= 2 * s and W >= 2 * s, "corner patches require H, W >= 2*stride"

    sW, sH = s * W, s * H
    L = 2 * sW + 2 * sH            # all 1x1-conv boundary pixels of one sample
    Q = 4 * s * s                  # all corner output pixels of one sample
    L_pad = _round_up(L, 128)      # lane-dense stores
    Q_pad = _round_up(Q, 128)

    # ---- boundary gathers (boundary-sized XLA slices, kept in x.dtype) -----
    top = x[:, :, 0:s, :].reshape(N, C, sW)
    bot = x[:, :, H - s:, :].reshape(N, C, sW)
    # Pre-transpose the column slabs so H sits on the lane axis (no in-kernel
    # per-column cross-lane gathers).
    left = jnp.swapaxes(x[:, :, :, 0:s], 2, 3).reshape(N, C, sH)
    right = jnp.swapaxes(x[:, :, :, W - s:], 2, 3).reshape(N, C, sH)
    bmat = jnp.concatenate([top, bot, left, right], axis=2)        # (N, C, L)
    bmat = jnp.pad(bmat, ((0, 0), (0, 0), (0, L_pad - L)))

    pmat = jnp.concatenate(                                        # (N, 4C, Q)
        [_corner_patches(x, 0, 0, s),
         _corner_patches(x, 0, W - 2 * s, s),
         _corner_patches(x, H - 2 * s, 0, s),
         _corner_patches(x, H - 2 * s, W - 2 * s, s)], axis=2)
    pmat = jnp.pad(pmat, ((0, 0), (0, 0), (0, Q_pad - Q)))

    # ---- parameters: MXU operands in x.dtype, biases / accumulation in f32 --
    w1_k = w1.astype(x.dtype)                                      # (C, C)
    # (C_out, C_in, 2, 2) -> (C, 4C) with flat row index (2i+j)*C + c_in.
    w2_k = jnp.transpose(w2, (0, 2, 3, 1)).reshape(C, 4 * C).astype(x.dtype)
    b1_k = b1.astype(jnp.float32).reshape(C, 1)
    b2_k = b2.astype(jnp.float32).reshape(C, 1)

    # NOTE(v7x): grid=(N,) with "parallel" semantics; for N == 1 a channel-tile
    # axis could be added to feed both TensorCores, omitted here for clarity.
    y1, y2 = pl.pallas_call(
        _ring_conv_kernel,
        out_shape=(jax.ShapeDtypeStruct((N, C, L_pad), x.dtype),
                   jax.ShapeDtypeStruct((N, C, Q_pad), x.dtype)),
        grid=(N,),
        in_specs=[
            pl.BlockSpec((1, C, L_pad), lambda n: (n, 0, 0)),
            pl.BlockSpec((1, 4 * C, Q_pad), lambda n: (n, 0, 0)),
            pl.BlockSpec((C, C), lambda n: (0, 0)),
            pl.BlockSpec((C, 1), lambda n: (0, 0)),
            pl.BlockSpec((C, 4 * C), lambda n: (0, 0)),
            pl.BlockSpec((C, 1), lambda n: (0, 0)),
        ],
        out_specs=(pl.BlockSpec((1, C, L_pad), lambda n: (n, 0, 0)),
                   pl.BlockSpec((1, C, Q_pad), lambda n: (n, 0, 0))),
        compiler_params=pltpu.CompilerParams(
            dimension_semantics=("parallel",)),
    )(bmat, pmat, w1_k, b1_k, w2_k, b2_k)

    # ---- unpack the ring results --------------------------------------------
    y_top = y1[:, :, 0:sW].reshape(N, C, s, W)
    y_bot = y1[:, :, sW:2 * sW].reshape(N, C, s, W)
    y_left = jnp.swapaxes(
        y1[:, :, 2 * sW:2 * sW + sH].reshape(N, C, s, H), 2, 3)    # (N,C,H,s)
    y_right = jnp.swapaxes(
        y1[:, :, 2 * sW + sH:L].reshape(N, C, s, H), 2, 3)
    cor = y2[:, :, 0:Q].reshape(N, C, 4, s, s)                     # TL,TR,BL,BR

    # ---- stitch ring + untouched interior (XLA copies, no Pallas round trip)
    top_band = jnp.concatenate([cor[:, :, 0], y_top, cor[:, :, 1]], axis=3)
    bot_band = jnp.concatenate([cor[:, :, 2], y_bot, cor[:, :, 3]], axis=3)
    mid_band = jnp.concatenate([y_left, x, y_right], axis=3)
    return jnp.concatenate([top_band, mid_band, bot_band], axis=2)


def reference_forward(x, w1, b1, w2, b2, s=1):
    """Pure-JAX port of the PyTorch forward (for verification)."""
    N, C, H, W = x.shape
    row = jnp.concatenate([x[:, :, 0:s], x[:, :, H - s:]], axis=2)
    col = jnp.concatenate([x[:, :, :, 0:s], x[:, :, :, W - s:]], axis=3)
    corner = jnp.concatenate(
        [x[:, :, 0:2 * s, 0:2 * s], x[:, :, 0:2 * s, W - 2 * s:],
         x[:, :, H - 2 * s:, 0:2 * s], x[:, :, H - 2 * s:, W - 2 * s:]], axis=3)
    row = jnp.einsum('oc,nchw->nohw', w1, row) + b1[None, :, None, None]
    col = jnp.einsum('oc,nchw->nohw', w1, col) + b1[None, :, None, None]
    corner = b2[None, :, None, None] + sum(
        jnp.einsum('oc,nchw->nohw', w2[:, :, i, j], corner[:, :, i::2, j::2])
        for i in range(2) for j in range(2))
    x = jnp.concatenate([row[:, :, 0:s], x, row[:, :, s:]], axis=2)
    col = jnp.concatenate([corner[:, :, :, 0:2 * s], col,
                           corner[:, :, :, 2 * s:]], axis=2)
    x = jnp.concatenate([col[:, :, :, 0:s], x, col[:, :, :, s:]], axis=3)
    return x


if __name__ == "__main__":
    key = jax.random.PRNGKey(0)
    for (N, C, H, W, s) in [(2, 4, 16, 16, 1), (2, 4, 16, 16, 2)]:
        k1, k2, k3, k4, k5, key = jax.random.split(key, 6)
        w1 = 0.1 * jax.random.normal(k1, (C, C), jnp.float32)        # 1x1 conv weight
        b1 = 0.1 * jax.random.normal(k2, (C,), jnp.float32)          # 1x1 conv bias
        w2 = 0.1 * jax.random.normal(k3, (C, C, 2, 2), jnp.float32)  # 2x2 conv weight
        b2 = 0.1 * jax.random.normal(k4, (C,), jnp.float32)          # 2x2 conv bias
        x = jax.random.normal(k5, (N, C, H, W), jnp.float32)

        out = learning_padding_by_convolution(x, w1, b1, w2, b2, stride=s)
        out = jax.block_until_ready(out)

        ref = reference_forward(x, w1, b1, w2, b2, s=s)
        assert out.shape == (N, C, H + 2 * s, W + 2 * s), out.shape
        max_err = float(jnp.max(jnp.abs(out - ref)))
        assert max_err < 1e-4, f"stride={s}: max abs error too large: {max_err}"

    print("KERNEL_OK")
</pallas_src>

<mosaic_0001>
module attributes {stable_mosaic.version = 11 : i64} {
  func.func @_ring_conv_kernel(%arg0: i32, %arg1: memref<1x4x128xf32, #tpu.memory_space<vmem>>, %arg2: memref<1x16x128xf32, #tpu.memory_space<vmem>>, %arg3: memref<4x4xf32, #tpu.memory_space<vmem>>, %arg4: memref<4x1xf32, #tpu.memory_space<vmem>>, %arg5: memref<4x16xf32, #tpu.memory_space<vmem>>, %arg6: memref<4x1xf32, #tpu.memory_space<vmem>>, %arg7: memref<1x4x128xf32, #tpu.memory_space<vmem>>, %arg8: memref<1x4x128xf32, #tpu.memory_space<vmem>>) attributes {dimension_semantics = [#tpu.dimension_semantics<parallel>], iteration_bounds = array<i64: 2>, scalar_prefetch = 0 : i64, scratch_operands = 0 : i64, tpu.core_type = #tpu.core_type<tc>, window_params = [{transform_indices = @transform_0, window_bounds = array<i64: 1, 4, 128>}, {transform_indices = @transform_1, window_bounds = array<i64: 1, 16, 128>}, {pipeline_mode = #tpu.pipeline_mode<synchronous>, transform_indices = @transform_2, window_bounds = array<i64: 4, 4>}, {pipeline_mode = #tpu.pipeline_mode<synchronous>, transform_indices = @transform_3, window_bounds = array<i64: 4, 1>}, {pipeline_mode = #tpu.pipeline_mode<synchronous>, transform_indices = @transform_4, window_bounds = array<i64: 4, 16>}, {pipeline_mode = #tpu.pipeline_mode<synchronous>, transform_indices = @transform_5, window_bounds = array<i64: 4, 1>}, {transform_indices = @transform_6, window_bounds = array<i64: 1, 4, 128>}, {transform_indices = @transform_7, window_bounds = array<i64: 1, 4, 128>}]} {
    %c0 = arith.constant 0 : index
    %c0_0 = arith.constant 0 : index
    %0 = vector.load %arg3[%c0, %c0_0] : memref<4x4xf32, #tpu.memory_space<vmem>>, vector<4x4xf32>
    %c0_1 = arith.constant 0 : index
    %c0_2 = arith.constant 0 : index
    %c0_3 = arith.constant 0 : index
    %1 = vector.load %arg1[%c0_1, %c0_2, %c0_3] : memref<1x4x128xf32, #tpu.memory_space<vmem>>, vector<1x4x128xf32>
    %2 = vector.shape_cast %1 : vector<1x4x128xf32> to vector<4x128xf32>
    %cst = arith.constant dense<0.000000e+00> : vector<4x128xf32>
    %3 = tpu.matmul %0, %2, %cst {dimension_numbers = #tpu.dot_dimension_numbers<[1], [0], [0], [1], [0, 0, 1, 1], [], []>} : vector<4x4xf32>, vector<4x128xf32>, vector<4x128xf32> -> vector<4x128xf32>
    %c0_4 = arith.constant 0 : index
    %c0_5 = arith.constant 0 : index
    %4 = vector.load %arg4[%c0_4, %c0_5] : memref<4x1xf32, #tpu.memory_space<vmem>>, vector<4x1xf32>
    %5 = vector.broadcast %4 : vector<4x1xf32> to vector<4x128xf32>
    %6 = arith.addf %3, %5 : vector<4x128xf32>
    %c0_6 = arith.constant 0 : index
    %c0_7 = arith.constant 0 : index
    %c0_8 = arith.constant 0 : index
    %7 = vector.load %arg7[%c0_6, %c0_7, %c0_8] : memref<1x4x128xf32, #tpu.memory_space<vmem>>, vector<1x4x128xf32>
    %8 = vector.shape_cast %7 : vector<1x4x128xf32> to vector<4x128xf32>
    %9 = vector.shape_cast %6 : vector<4x128xf32> to vector<1x4x128xf32>
    tpu.vector_store %arg7[%c0_6, %c0_7, %c0_8], %9 {strides = array<i32>} : memref<1x4x128xf32, #tpu.memory_space<vmem>>, vector<1x4x128xf32>,
    %c0_9 = arith.constant 0 : index
    %c0_10 = arith.constant 0 : index
    %10 = vector.load %arg5[%c0_9, %c0_10] : memref<4x16xf32, #tpu.memory_space<vmem>>, vector<4x16xf32>
    %c0_11 = arith.constant 0 : index
    %c0_12 = arith.constant 0 : index
    %c0_13 = arith.constant 0 : index
    %11 = vector.load %arg2[%c0_11, %c0_12, %c0_13] : memref<1x16x128xf32, #tpu.memory_space<vmem>>, vector<1x16x128xf32>
    %12 = vector.shape_cast %11 : vector<1x16x128xf32> to vector<16x128xf32>
    %cst_14 = arith.constant dense<0.000000e+00> : vector<4x128xf32>
    %13 = tpu.matmul %10, %12, %cst_14 {dimension_numbers = #tpu.dot_dimension_numbers<[1], [0], [0], [1], [0, 0, 1, 1], [], []>} : vector<4x16xf32>, vector<16x128xf32>, vector<4x128xf32> -> vector<4x128xf32>
    %c0_15 = arith.constant 0 : index
    %c0_16 = arith.constant 0 : index
    %14 = vector.load %arg6[%c0_15, %c0_16] : memref<4x1xf32, #tpu.memory_space<vmem>>, vector<4x1xf32>
    %15 = vector.broadcast %14 : vector<4x1xf32> to vector<4x128xf32>
    %16 = arith.addf %13, %15 : vector<4x128xf32>
    %c0_17 = arith.constant 0 : index
    %c0_18 = arith.constant 0 : index
    %c0_19 = arith.constant 0 : index
    %17 = vector.load %arg8[%c0_17, %c0_18, %c0_19] : memref<1x4x128xf32, #tpu.memory_space<vmem>>, vector<1x4x128xf32>
    %18 = vector.shape_cast %17 : vector<1x4x128xf32> to vector<4x128xf32>
    %19 = vector.shape_cast %16 : vector<4x128xf32> to vector<1x4x128xf32>
    tpu.vector_store %arg8[%c0_17, %c0_18, %c0_19], %19 {strides = array<i32>} : memref<1x4x128xf32, #tpu.memory_space<vmem>>, vector<1x4x128xf32>,
    return
  }
  func.func @transform_0(%arg0: i32) -> (i32, i32, i32) {
    %c0_i32 = arith.constant 0 : i32
    %c0_i32_0 = arith.constant 0 : i32
    %c0_i32_1 = arith.constant 0 : i32
    return %arg0, %c0_i32, %c0_i32_0 : i32, i32, i32
  }
  func.func @transform_1(%arg0: i32) -> (i32, i32, i32) {
    %c0_i32 = arith.constant 0 : i32
    %c0_i32_0 = arith.constant 0 : i32
    %c0_i32_1 = arith.constant 0 : i32
    return %arg0, %c0_i32, %c0_i32_0 : i32, i32, i32
  }
  func.func @transform_2(%arg0: i32) -> (i32, i32) {
    %c0_i32 = arith.constant 0 : i32
    %c0_i32_0 = arith.constant 0 : i32
    %c0_i32_1 = arith.constant 0 : i32
    return %c0_i32, %c0_i32_0 : i32, i32
  }
  func.func @transform_3(%arg0: i32) -> (i32, i32) {
    %c0_i32 = arith.constant 0 : i32
    %c0_i32_0 = arith.constant 0 : i32
    %c0_i32_1 = arith.constant 0 : i32
    return %c0_i32, %c0_i32_0 : i32, i32
  }
  func.func @transform_4(%arg0: i32) -> (i32, i32) {
    %c0_i32 = arith.constant 0 : i32
    %c0_i32_0 = arith.constant 0 : i32
    %c0_i32_1 = arith.constant 0 : i32
    return %c0_i32, %c0_i32_0 : i32, i32
  }
  func.func @transform_5(%arg0: i32) -> (i32, i32) {
    %c0_i32 = arith.constant 0 : i32
    %c0_i32_0 = arith.constant 0 : i32
    %c0_i32_1 = arith.constant 0 : i32
    return %c0_i32, %c0_i32_0 : i32, i32
  }
  func.func @transform_6(%arg0: i32) -> (i32, i32, i32) {
    %c0_i32 = arith.constant 0 : i32
    %c0_i32_0 = arith.constant 0 : i32
    %c0_i32_1 = arith.constant 0 : i32
    return %arg0, %c0_i32, %c0_i32_0 : i32, i32, i32
  }
  func.func @transform_7(%arg0: i32) -> (i32, i32, i32) {
    %c0_i32 = arith.constant 0 : i32
    %c0_i32_0 = arith.constant 0 : i32
    %c0_i32_1 = arith.constant 0 : i32
    return %arg0, %c0_i32, %c0_i32_0 : i32, i32, i32
  }
}

</mosaic_0001>

<llo_original>
// kernel: learning_padding_by_convolution.1
$region0: #{learning_padding_by_convolution.1}
  #allocation0 [shape = 'u32[]', space=smem, size = 0x4, offset = 0x4, fixed_abs, tag = 'smem constant byte address 0x4 - core index']
  #allocation1 [shape = 'u32[144,128]{1,0:T(1,128)}', space=vmem, size = 0x12000, scoped, tag = 'internal scratch']
  %s0 = inlined_call_operand.vmem [shape: f32[2,4,128], index: 0, kind: input, shape index: {}]
  %s1 = inlined_call_operand.vmem [shape: f32[2,16,128], index: 1, kind: input, shape index: {}]
  %s2 = inlined_call_operand.vmem [shape: f32[4,4], index: 2, kind: input, shape index: {}]
  %s3 = inlined_call_operand.vmem [shape: f32[4,1], index: 3, kind: input, shape index: {}]
  %s4 = inlined_call_operand.vmem [shape: f32[4,16], index: 4, kind: input, shape index: {}]
  %s5 = inlined_call_operand.vmem [shape: f32[4,1], index: 5, kind: input, shape index: {}]
  %s6 = inlined_call_operand.vmem [shape: f32[2,4,128], index: 6, kind: output, shape index: {0}]
  %s7 = inlined_call_operand.vmem [shape: f32[2,4,128], index: 7, kind: output, shape index: {1}]
  %8 = xla_tuple %s6, %s7
  %s9 = sld [smem:[#allocation0]]
  $region65: #{learning_padding_by_convolution.1} parent=0
    _
  %s11 = ssub.s32 1, %s9
  %s12 = scalar_select 0, %s11, %s9
  loop: start=0, step=1, limit=4
  $region2: #{learning_padding_by_convolution.1} parent=0 // loop_pre_header
    _
  $region3: #{learning_padding_by_convolution.1} parent=0 // loop_header
    %s14 = sphi 0, %s18
    %p15 = scmp.ge.s32.totalorder %s14, 4
    %s24 = sphi 0, %s26
    %s27 = sphi 0, %s24
    %s28 = sphi 0, %s27
    %s44 = sphi 0, %s28
    %s50 = sphi 0, %s52
    %s53 = sphi 0, %s50
    %s54 = sphi 0, %s53
    %s70 = sphi 0, %s54
    %s74 = sphi 0, %s74
    %s76 = sphi 0, %s74
    %s77 = sphi 0, %s76
    %s91 = sphi 0, %s77
    %s95 = sphi 0, %s95
    %s97 = sphi 0, %s95
    %s98 = sphi 0, %s97
    %s112 = sphi 0, %s98
    %s116 = sphi 0, %s116
    %s118 = sphi 0, %s116
    %s119 = sphi 0, %s118
    %s133 = sphi 0, %s119
    %s137 = sphi 0, %s137
    %s139 = sphi 0, %s137
    %s140 = sphi 0, %s139
    %s154 = sphi 0, %s140
    %s160 = sphi 0, %s162
    %s163 = sphi 0, %s160
    %s164 = sphi 0, %s163
    %s180 = sphi 0, %s164
    %s186 = sphi 0, %s188
    %s189 = sphi 0, %s186
    %s190 = sphi 0, %s189
    %s206 = sphi 0, %s190
  $region4: #{learning_padding_by_convolution.1} parent=0 // loop_header_branch
    %17 = sbr.rel (%p15) target = $region8
  $region5: #{learning_padding_by_convolution.1} parent=0 // loop_body
    %s19 = ssub.s32 %s14, 1
    %s20 = ssub.s32 %s14, 2
    %s21 = sadd.s32 %s14, 1
    %s22 = ssub.s32 %s14, %s21
    %p23 = scmp.eq.s32.totalorder %s22, 0
    %s25 = sadd.s32 %s24, 1
    %s26 = scalar_select %p23, %s24, %s25
    %p29 = pneg %p23
    %p30 = scmp.eq.s32.totalorder %s14, 1
    %p31 = por %p29, %p30
    %p32 = scmp.ne.s32.totalorder %s24, %s27
    %p33 = scmp.eq.s32.totalorder %s14, 0
    %p34 = por %p32, %p33
    %p35 = scmp.ne.s32.totalorder %s24, %s27
    %p36 = scmp.eq.s32.totalorder %s19, 1
    %p37 = por %p35, %p36
    %p38 = scmp.ne.s32.totalorder %s27, %s28
    %p39 = scmp.eq.s32.totalorder %s19, 0
    %p40 = por %p38, %p39
    %p41 = scmp.ne.s32.totalorder %s27, %s28
    %p42 = scmp.eq.s32.totalorder %s20, 1
    %p43 = por %p41, %p42
    %p45 = scmp.ne.s32.totalorder %s28, %s44
    %p46 = scmp.eq.s32.totalorder %s20, 0
    %p47 = por %p45, %p46
    %s48 = ssub.s32 %s14, %s21
    %p49 = scmp.eq.s32.totalorder %s48, 0
    %s51 = sadd.s32 %s50, 1
    %s52 = scalar_select %p49, %s50, %s51
    %p55 = pneg %p49
    %p56 = scmp.eq.s32.totalorder %s14, 1
    %p57 = por %p55, %p56
    %p58 = scmp.ne.s32.totalorder %s50, %s53
    %p59 = scmp.eq.s32.totalorder %s14, 0
    %p60 = por %p58, %p59
    %p61 = scmp.ne.s32.totalorder %s50, %s53
    %p62 = scmp.eq.s32.totalorder %s19, 1
    %p63 = por %p61, %p62
    %p64 = scmp.ne.s32.totalorder %s53, %s54
    %p65 = scmp.eq.s32.totalorder %s19, 0
    %p66 = por %p64, %p65
    %p67 = scmp.ne.s32.totalorder %s53, %s54
    %p68 = scmp.eq.s32.totalorder %s20, 1
    %p69 = por %p67, %p68
    %p71 = scmp.ne.s32.totalorder %s54, %s70
    %p72 = scmp.eq.s32.totalorder %s20, 0
    %p73 = por %p71, %p72
    %s75 = sadd.s32 %s74, 1
    %p78 = scmp.eq.s32.totalorder %s14, 1
    %p79 = scmp.ne.s32.totalorder %s74, %s76
    %p80 = scmp.eq.s32.totalorder %s14, 0
    %p81 = por %p79, %p80
    %p82 = scmp.ne.s32.totalorder %s74, %s76
    %p83 = scmp.eq.s32.totalorder %s19, 1
    %p84 = por %p82, %p83
    %p85 = scmp.ne.s32.totalorder %s76, %s77
    %p86 = scmp.eq.s32.totalorder %s19, 0
    %p87 = por %p85, %p86
    %p88 = scmp.ne.s32.totalorder %s76, %s77
    %p89 = scmp.eq.s32.totalorder %s20, 1
    %p90 = por %p88, %p89
    %p92 = scmp.ne.s32.totalorder %s77, %s91
    %p93 = scmp.eq.s32.totalorder %s20, 0
    %p94 = por %p92, %p93
    %s96 = sadd.s32 %s95, 1
    %p99 = scmp.eq.s32.totalorder %s14, 1
    %p100 = scmp.ne.s32.totalorder %s95, %s97
    %p101 = scmp.eq.s32.totalorder %s14, 0
    %p102 = por %p100, %p101
    %p103 = scmp.ne.s32.totalorder %s95, %s97
    %p104 = scmp.eq.s32.totalorder %s19, 1
    %p105 = por %p103, %p104
    %p106 = scmp.ne.s32.totalorder %s97, %s98
    %p107 = scmp.eq.s32.totalorder %s19, 0
    %p108 = por %p106, %p107
    %p109 = scmp.ne.s32.totalorder %s97, %s98
    %p110 = scmp.eq.s32.totalorder %s20, 1
    %p111 = por %p109, %p110
    %p113 = scmp.ne.s32.totalorder %s98, %s112
    %p114 = scmp.eq.s32.totalorder %s20, 0
    %p115 = por %p113, %p114
    %s117 = sadd.s32 %s116, 1
    %p120 = scmp.eq.s32.totalorder %s14, 1
    %p121 = scmp.ne.s32.totalorder %s116, %s118
    %p122 = scmp.eq.s32.totalorder %s14, 0
    %p123 = por %p121, %p122
    %p124 = scmp.ne.s32.totalorder %s116, %s118
    %p125 = scmp.eq.s32.totalorder %s19, 1
    %p126 = por %p124, %p125
    %p127 = scmp.ne.s32.totalorder %s118, %s119
    %p128 = scmp.eq.s32.totalorder %s19, 0
    %p129 = por %p127, %p128
    %p130 = scmp.ne.s32.totalorder %s118, %s119
    %p131 = scmp.eq.s32.totalorder %s20, 1
    %p132 = por %p130, %p131
    %p134 = scmp.ne.s32.totalorder %s119, %s133
    %p135 = scmp.eq.s32.totalorder %s20, 0
    %p136 = por %p134, %p135
    %s138 = sadd.s32 %s137, 1
    %p141 = scmp.eq.s32.totalorder %s14, 1
    %p142 = scmp.ne.s32.totalorder %s137, %s139
    %p143 = scmp.eq.s32.totalorder %s14, 0
    %p144 = por %p142, %p143
    %p145 = scmp.ne.s32.totalorder %s137, %s139
    %p146 = scmp.eq.s32.totalorder %s19, 1
    %p147 = por %p145, %p146
    %p148 = scmp.ne.s32.totalorder %s139, %s140
    %p149 = scmp.eq.s32.totalorder %s19, 0
    %p150 = por %p148, %p149
    %p151 = scmp.ne.s32.totalorder %s139, %s140
    %p152 = scmp.eq.s32.totalorder %s20, 1
    %p153 = por %p151, %p152
    %p155 = scmp.ne.s32.totalorder %s140, %s154
    %p156 = scmp.eq.s32.totalorder %s20, 0
    %p157 = por %p155, %p156
    %s158 = ssub.s32 %s14, %s21
    %p159 = scmp.eq.s32.totalorder %s158, 0
    %s161 = sadd.s32 %s160, 1
    %s162 = scalar_select %p159, %s160, %s161
    %p165 = pneg %p159
    %p166 = scmp.eq.s32.totalorder %s14, 1
    %p167 = por %p165, %p166
    %p168 = scmp.ne.s32.totalorder %s160, %s163
    %p169 = scmp.eq.s32.totalorder %s14, 0
    %p170 = por %p168, %p169
    %p171 = scmp.ne.s32.totalorder %s160, %s163
    %p172 = scmp.eq.s32.totalorder %s19, 1
    %p173 = por %p171, %p172
    %p174 = scmp.ne.s32.totalorder %s163, %s164
    %p175 = scmp.eq.s32.totalorder %s19, 0
    %p176 = por %p174, %p175
    %p177 = scmp.ne.s32.totalorder %s163, %s164
    %p178 = scmp.eq.s32.totalorder %s20, 1
    %p179 = por %p177, %p178
    %p181 = scmp.ne.s32.totalorder %s164, %s180
    %p182 = scmp.eq.s32.totalorder %s20, 0
    %p183 = por %p181, %p182
    %s184 = ssub.s32 %s14, %s21
    %p185 = scmp.eq.s32.totalorder %s184, 0
    %s187 = sadd.s32 %s186, 1
    %s188 = scalar_select %p185, %s186, %s187
    %p191 = pneg %p185
    %p192 = scmp.eq.s32.totalorder %s14, 1
    %p193 = por %p191, %p192
    %p194 = scmp.ne.s32.totalorder %s186, %s189
    %p195 = scmp.eq.s32.totalorder %s14, 0
    %p196 = por %p194, %p195
    %p197 = scmp.ne.s32.totalorder %s186, %s189
    %p198 = scmp.eq.s32.totalorder %s19, 1
    %p199 = por %p197, %p198
    %p200 = scmp.ne.s32.totalorder %s189, %s190
    %p201 = scmp.eq.s32.totalorder %s19, 0
    %p202 = por %p200, %p201
    %p203 = scmp.ne.s32.totalorder %s189, %s190
    %p204 = scmp.eq.s32.totalorder %s20, 1
    %p205 = por %p203, %p204
    %p207 = scmp.ne.s32.totalorder %s190, %s206
    %p208 = scmp.eq.s32.totalorder %s20, 0
    %p209 = por %p207, %p208
    %p210 = scmp.le.s32.totalorder 1, %s14
    %p211 = scmp.lt.s32.totalorder %s14, 3
    %p212 = pnand %p210, %p211
    %p213 = pneg %p212
    // Predicated region
    $region9: #{learning_padding_by_convolution.1} parent=5 // pred_check
      _
    $region10: #{learning_padding_by_convolution.1} parent=5 // pred_check_branch
      %215 = sbr.rel (%p212) target = $region12
    $region11: #{learning_padding_by_convolution.1} parent=5 // pred_region
      %s216 = ssub.s32 %s14, 1
      // Predicated region
      $region13: #{learning_padding_by_convolution.1} parent=11 // pred_check
        %p217 = pneg %p87
      $region14: #{learning_padding_by_convolution.1} parent=11 // pred_check_branch
        %219 = sbr.rel (%p217) target = $region16
      $region15: #{learning_padding_by_convolution.1} parent=11 // pred_region
        _
      $region16: #{learning_padding_by_convolution.1} parent=11 // pred_fallthru
        _
      // Predicated region
      $region17: #{learning_padding_by_convolution.1} parent=11 // pred_check
        %p220 = pneg %p108
      $region18: #{learning_padding_by_convolution.1} parent=11 // pred_check_branch
        %222 = sbr.rel (%p220) target = $region20
      $region19: #{learning_padding_by_convolution.1} parent=11 // pred_region
        _
      $region20: #{learning_padding_by_convolution.1} parent=11 // pred_fallthru
        _
      // Predicated region
      $region21: #{learning_padding_by_convolution.1} parent=11 // pred_check
        %p223 = pneg %p129
      $region22: #{learning_padding_by_convolution.1} parent=11 // pred_check_branch
        %225 = sbr.rel (%p223) target = $region24
      $region23: #{learning_padding_by_convolution.1} parent=11 // pred_region
        _
      $region24: #{learning_padding_by_convolution.1} parent=11 // pred_fallthru
        _
      // Predicated region
      $region25: #{learning_padding_by_convolution.1} parent=11 // pred_check
        %p226 = pneg %p150
      $region26: #{learning_padding_by_convolution.1} parent=11 // pred_check_branch
        %228 = sbr.rel (%p226) target = $region28
      $region27: #{learning_padding_by_convolution.1} parent=11 // pred_region
        _
      $region28: #{learning_padding_by_convolution.1} parent=11 // pred_fallthru
        _
    $region12: #{learning_padding_by_convolution.1} parent=5 // pred_fallthru
      _
    %p229 = scmp.lt.s32.totalorder %s14, 2
    // Predicated region
    $region29: #{learning_padding_by_convolution.1} parent=5 // pred_check
      %p230 = pneg %p229
    $region30: #{learning_padding_by_convolution.1} parent=5 // pred_check_branch
      %232 = sbr.rel (%p230) target = $region32
    $region31: #{learning_padding_by_convolution.1} parent=5 // pred_region
      // Predicated region
      $region33: #{learning_padding_by_convolution.1} parent=31 // pred_check
        %p233 = pneg %p34
      $region34: #{learning_padding_by_convolution.1} parent=31 // pred_check_branch
        %235 = sbr.rel (%p233) target = $region36
      $region35: #{learning_padding_by_convolution.1} parent=31 // pred_region
        %p236 = scmp.lt.s32.totalorder %s14, 1
        %s237 = scalar_select %p236, %s14, 1
        %s238 = smul.addr %s237, 4
        %s239 = scalar_lea.vmem %s0, %s238
      $region36: #{learning_padding_by_convolution.1} parent=31 // pred_fallthru
        _
      // Predicated region
      $region37: #{learning_padding_by_convolution.1} parent=31 // pred_check
        %p240 = pneg %p60
      $region38: #{learning_padding_by_convolution.1} parent=31 // pred_check_branch
        %242 = sbr.rel (%p240) target = $region40
      $region39: #{learning_padding_by_convolution.1} parent=31 // pred_region
        %p243 = scmp.lt.s32.totalorder %s14, 1
        %s244 = scalar_select %p243, %s14, 1
        %s245 = smul.addr %s244, 2
        %s246 = smul.addr %s245, 8
        %s247 = scalar_lea.vmem %s1, %s246
      $region40: #{learning_padding_by_convolution.1} parent=31 // pred_fallthru
        _
    $region32: #{learning_padding_by_convolution.1} parent=5 // pred_fallthru
      _
    %p248 = scmp.le.s32.totalorder 1, %s14
    %p249 = scmp.lt.s32.totalorder %s14, 3
    %p250 = pnand %p248, %p249
    %p251 = pneg %p250
    // Predicated region
    $region41: #{learning_padding_by_convolution.1} parent=5 // pred_check
      _
    $region42: #{learning_padding_by_convolution.1} parent=5 // pred_check_branch
      %253 = sbr.rel (%p250) target = $region44
    $region43: #{learning_padding_by_convolution.1} parent=5 // pred_region
      %s254 = ssub.s32 %s14, 1
      %p255 = scmp.lt.s32.totalorder %s19, 1
      %s256 = scalar_select %p255, %s19, 1
      %s257 = smul.addr %s256, 4
      %s258 = scalar_lea.vmem %s0, %s257
      %p259 = pneg %p40
      %p260 = pneg %p37
      %p261 = scmp.lt.s32.totalorder %s19, 1
      %s262 = scalar_select %p261, %s19, 1
      %s263 = smul.addr %s262, 2
      %s264 = smul.addr %s263, 8
      %s265 = scalar_lea.vmem %s1, %s264
      %p266 = pneg %p66
      %p267 = pneg %p63
      %p268 = pneg %p87
      %p269 = pneg %p84
      %p270 = pneg %p108
      %p271 = pneg %p105
      %p272 = pneg %p129
      %p273 = pneg %p126
      %p274 = pneg %p150
      %p275 = pneg %p147
      %p276 = pneg %p176
      %p277 = pneg %p173
      %p278 = scmp.lt.s32.totalorder %s19, 1
      %s279 = scalar_select %p278, %s19, 1
      %s280 = smul.addr %s279, 4
      %s281 = scalar_lea.vmem %s6, %s280
      %p282 = pneg %p202
      %p283 = pneg %p199
      %p284 = scmp.lt.s32.totalorder %s19, 1
      %s285 = scalar_select %p284, %s19, 1
      %s286 = smul.addr %s285, 4
      %s287 = scalar_lea.vmem %s7, %s286
      %p288 = scmp.lt.s32.totalorder %s19, 1
      %s289 = scalar_select %p288, %s19, 1
      %s290 = smul.addr %s289, 4
      %s291 = scalar_lea.vmem %s0, %s290
      %p292 = scmp.lt.s32.totalorder %s19, 1
      %s293 = scalar_select %p292, %s19, 1
      %s294 = smul.addr %s293, 2
      %s295 = smul.addr %s294, 8
      %s296 = scalar_lea.vmem %s1, %s295
      %p297 = scmp.lt.s32.totalorder %s19, 1
      %s298 = scalar_select %p297, %s19, 1
      %s299 = smul.addr %s298, 4
      %s300 = scalar_lea.vmem %s6, %s299
      %p301 = scmp.lt.s32.totalorder %s19, 1
      %s302 = scalar_select %p301, %s19, 1
      %s303 = smul.addr %s302, 4
      %s304 = scalar_lea.vmem %s7, %s303
      %v305 = vld [vmem:[%s2] sm:$0xf]
      %v306 = vld [vmem:[%s291] sm:$0xf]
      %v307 = vld [vmem:[%s3] sm:$0xf]
      %309 = vset.pattern.permute.xlu0 0
      %310 = vperm.xlu0 %309, %v307
      %v311 = vpop.permute.xlu0 %310
      %vm313 = vcmask 31744
      %v315 = vsel %vm313, %v305, 0
      %vm317 = vcmask 1043456
      %v319 = vsel %vm317, %v306, 0
      %321 = vmatprep.subr.mxu0 0.0
      %322 = vmatpush1.msra.mxu0 %v319
      %323 = vmatprep.subr.mxu0 0.0
      %324 = vmatpush1.msra.mxu0 0.0
      %325 = vmatprep.subr.mxu0 0.0
      %326 = vmatpush1.msra.mxu0 0.0
      %327 = vmatprep.subr.mxu0 0.0
      %328 = vmatpush1.msra.mxu0 0.0
      %329 = vmatprep.subr.mxu0 0.0
      %330 = vmatpush1.msra.mxu0 0.0
      %331 = vmatprep.subr.mxu0 0.0
      %332 = vmatpush1.msra.mxu0 0.0
      %333 = vmatprep.subr.mxu0 0.0
      %334 = vmatpush1.msra.mxu0 0.0
      %335 = vmatprep.subr.mxu0 0.0
      %336 = vmatpush1.msra.mxu0 0.0
      %337 = vmatprep.subr.mxu0 0.0
      %338 = vmatpush1.msra.mxu0 0.0
      %339 = vmatprep.subr.mxu0 0.0
      %340 = vmatpush1.msra.mxu0 0.0
      %341 = vmatprep.subr.mxu0 0.0
      %342 = vmatpush1.msra.mxu0 0.0
      %343 = vmatprep.subr.mxu0 0.0
      %344 = vmatpush1.msra.mxu0 0.0
      %345 = vmatprep.subr.mxu0 0.0
      %346 = vmatpush1.msra.mxu0 0.0
      %347 = vmatprep.subr.mxu0 0.0
      %348 = vmatpush1.msra.mxu0 0.0
      %349 = vmatprep.subr.mxu0 0.0
      %350 = vmatpush1.msra.mxu0 0.0
      %351 = vmatprep.subr.mxu0 0.0
      %352 = vmatpush1.msra.mxu0 0.0
      %353 = vmatprep.subr.mxu0 0.0
      %354 = vmatpush1.msra.mxu0 0.0
      %355 = vmatprep.subr.mxu0 0.0
      %356 = vmatpush1.msra.mxu0 0.0
      %357 = vmatprep.subr.mxu0 0.0
      %358 = vmatpush1.msra.mxu0 0.0
      %359 = vmatprep.subr.mxu0 0.0
      %360 = vmatpush1.msra.mxu0 0.0
      %361 = vmatprep.subr.mxu0 0.0
      %362 = vmatpush1.msra.mxu0 0.0
      %363 = vmatprep.subr.mxu0 0.0
      %364 = vmatpush1.msra.mxu0 0.0
      %365 = vmatprep.subr.mxu0 0.0
      %366 = vmatpush1.msra.mxu0 0.0
      %367 = vmatprep.subr.mxu0 0.0
      %368 = vmatpush1.msra.mxu0 0.0
      %369 = vmatprep.subr.mxu0 0.0
      %370 = vmatpush1.msra.mxu0 0.0
      %371 = vmatprep.subr.mxu0 0.0
      %372 = vmatpush1.msra.mxu0 0.0
      %373 = vmatprep.subr.mxu0 0.0
      %374 = vmatpush1.msra.mxu0 0.0
      %375 = vmatprep.subr.mxu0 0.0
      %376 = vmatpush1.msra.mxu0 0.0
      %377 = vmatprep.subr.mxu0 0.0
      %378 = vmatpush1.msra.mxu0 0.0
      %379 = vmatprep.subr.mxu0 0.0
      %380 = vmatpush1.msra.mxu0 0.0
      %381 = vmatprep.subr.mxu0 0.0
      %382 = vmatpush1.msra.mxu0 0.0
      %383 = vmatprep.subr.mxu0 0.0
      %384 = vmatpush1.msra.mxu0 0.0
      %385 = vmatprep.mubr.f32.mxu0 0.0
      %386 = vmatmul.mubr.f32.gmra.mrb[0].mxu0 %v315
      %v387 = vpop.f32.mrb[0].mxu0
      %v388 = vadd.f32 %v311, %v387
      %v389 = vpop.f32.mrb[0].mxu0
      %390 = vdwg.mxu0
      %391 = vst [vmem:[%s300] sm:$0xf] %v388
      %v392 = vld [vmem:[%s4] sm:$0xf]
      %v393 = vld [vmem:[%s296] sm:$0xff]
      %v394 = vld [vmem:[%s296 + $0x8] sm:$0xff]
      %v395 = vld [vmem:[%s5] sm:$0xf]
      %397 = vset.pattern.permute.xlu0 0
      %398 = vperm.xlu0 %397, %v395
      %v399 = vpop.permute.xlu0 %398
      %vm401 = vcmask 130048
      %v403 = vsel %vm401, %v392, 0
      %405 = vmatprep.subr.mxu0 0.0
      %406 = vmatpush1.msra.mxu0 %v393
      %407 = vmatprep.subr.mxu0 0.0
      %408 = vmatpush1.msra.mxu0 %v394
      %409 = vmatprep.subr.mxu0 0.0
      %410 = vmatpush1.msra.mxu0 0.0
      %411 = vmatprep.subr.mxu0 0.0
      %412 = vmatpush1.msra.mxu0 0.0
      %413 = vmatprep.subr.mxu0 0.0
      %414 = vmatpush1.msra.mxu0 0.0
      %415 = vmatprep.subr.mxu0 0.0
      %416 = vmatpush1.msra.mxu0 0.0
      %417 = vmatprep.subr.mxu0 0.0
      %418 = vmatpush1.msra.mxu0 0.0
      %419 = vmatprep.subr.mxu0 0.0
      %420 = vmatpush1.msra.mxu0 0.0
      %421 = vmatprep.subr.mxu0 0.0
      %422 = vmatpush1.msra.mxu0 0.0
      %423 = vmatprep.subr.mxu0 0.0
      %424 = vmatpush1.msra.mxu0 0.0
      %425 = vmatprep.subr.mxu0 0.0
      %426 = vmatpush1.msra.mxu0 0.0
      %427 = vmatprep.subr.mxu0 0.0
      %428 = vmatpush1.msra.mxu0 0.0
      %429 = vmatprep.subr.mxu0 0.0
      %430 = vmatpush1.msra.mxu0 0.0
      %431 = vmatprep.subr.mxu0 0.0
      %432 = vmatpush1.msra.mxu0 0.0
      %433 = vmatprep.subr.mxu0 0.0
      %434 = vmatpush1.msra.mxu0 0.0
      %435 = vmatprep.subr.mxu0 0.0
      %436 = vmatpush1.msra.mxu0 0.0
      %437 = vmatprep.subr.mxu0 0.0
      %438 = vmatpush1.msra.mxu0 0.0
      %439 = vmatprep.subr.mxu0 0.0
      %440 = vmatpush1.msra.mxu0 0.0
      %441 = vmatprep.subr.mxu0 0.0
      %442 = vmatpush1.msra.mxu0 0.0
      %443 = vmatprep.subr.mxu0 0.0
      %444 = vmatpush1.msra.mxu0 0.0
      %445 = vmatprep.subr.mxu0 0.0
      %446 = vmatpush1.msra.mxu0 0.0
      %447 = vmatprep.subr.mxu0 0.0
      %448 = vmatpush1.msra.mxu0 0.0
      %449 = vmatprep.subr.mxu0 0.0
      %450 = vmatpush1.msra.mxu0 0.0
      %451 = vmatprep.subr.mxu0 0.0
      %452 = vmatpush1.msra.mxu0 0.0
      %453 = vmatprep.subr.mxu0 0.0
      %454 = vmatpush1.msra.mxu0 0.0
      %455 = vmatprep.subr.mxu0 0.0
      %456 = vmatpush1.msra.mxu0 0.0
      %457 = vmatprep.subr.mxu0 0.0
      %458 = vmatpush1.msra.mxu0 0.0
      %459 = vmatprep.subr.mxu0 0.0
      %460 = vmatpush1.msra.mxu0 0.0
      %461 = vmatprep.subr.mxu0 0.0
      %462 = vmatpush1.msra.mxu0 0.0
      %463 = vmatprep.subr.mxu0 0.0
      %464 = vmatpush1.msra.mxu0 0.0
      %465 = vmatprep.subr.mxu0 0.0
      %466 = vmatpush1.msra.mxu0 0.0
      %467 = vmatprep.subr.mxu0 0.0
      %468 = vmatpush1.msra.mxu0 0.0
      %469 = vmatprep.mubr.f32.mxu0 0.0
      %470 = vmatmul.mubr.f32.gmra.mrb[0].mxu0 %v403
      %v471 = vpop.f32.mrb[0].mxu0
      %v472 = vadd.f32 %v399, %v471
      %v473 = vpop.f32.mrb[0].mxu0
      %474 = vdwg.mxu0
      %475 = vst [vmem:[%s304] sm:$0xf] %v472
      %p476 = scmp.lt.s32.totalorder %s19, 1
      %s477 = scalar_select %p476, %s19, 1
      %s478 = smul.addr %s477, 4
      %s479 = scalar_lea.vmem %s6, %s478
      %p480 = scmp.lt.s32.totalorder %s19, 1
      %s481 = scalar_select %p480, %s19, 1
      %s482 = smul.addr %s481, 4
      %s483 = scalar_lea.vmem %s7, %s482
      // Predicated region
      $region45: #{learning_padding_by_convolution.1} parent=43 // pred_check
        %p484 = pneg %p173
      $region46: #{learning_padding_by_convolution.1} parent=43 // pred_check_branch
        %486 = sbr.rel (%p484) target = $region48
      $region47: #{learning_padding_by_convolution.1} parent=43 // pred_region
        _
      $region48: #{learning_padding_by_convolution.1} parent=43 // pred_fallthru
        _
      // Predicated region
      $region49: #{learning_padding_by_convolution.1} parent=43 // pred_check
        %p487 = pneg %p199
      $region50: #{learning_padding_by_convolution.1} parent=43 // pred_check_branch
        %489 = sbr.rel (%p487) target = $region52
      $region51: #{learning_padding_by_convolution.1} parent=43 // pred_region
        _
      $region52: #{learning_padding_by_convolution.1} parent=43 // pred_fallthru
        _
    $region44: #{learning_padding_by_convolution.1} parent=5 // pred_fallthru
      _
    %p490 = scmp.le.s32.totalorder 2, %s14
    // Predicated region
    $region53: #{learning_padding_by_convolution.1} parent=5 // pred_check
      %p491 = pneg %p490
    $region54: #{learning_padding_by_convolution.1} parent=5 // pred_check_branch
      %493 = sbr.rel (%p491) target = $region56
    $region55: #{learning_padding_by_convolution.1} parent=5 // pred_region
      %s494 = ssub.s32 %s14, 2
      // Predicated region
      $region57: #{learning_padding_by_convolution.1} parent=55 // pred_check
        %p495 = pneg %p179
      $region58: #{learning_padding_by_convolution.1} parent=55 // pred_check_branch
        %497 = sbr.rel (%p495) target = $region60
      $region59: #{learning_padding_by_convolution.1} parent=55 // pred_region
        %p498 = scmp.lt.s32.totalorder %s20, 1
        %s499 = scalar_select %p498, %s20, 1
        %s500 = smul.addr %s499, 4
        %s501 = scalar_lea.vmem %s6, %s500
      $region60: #{learning_padding_by_convolution.1} parent=55 // pred_fallthru
        _
      // Predicated region
      $region61: #{learning_padding_by_convolution.1} parent=55 // pred_check
        %p502 = pneg %p205
      $region62: #{learning_padding_by_convolution.1} parent=55 // pred_check_branch
        %504 = sbr.rel (%p502) target = $region64
      $region63: #{learning_padding_by_convolution.1} parent=55 // pred_region
        %p505 = scmp.lt.s32.totalorder %s20, 1
        %s506 = scalar_select %p505, %s20, 1
        %s507 = smul.addr %s506, 4
        %s508 = scalar_lea.vmem %s7, %s507
      $region64: #{learning_padding_by_convolution.1} parent=55 // pred_fallthru
        _
    $region56: #{learning_padding_by_convolution.1} parent=5 // pred_fallthru
      _
  $region6: #{learning_padding_by_convolution.1} parent=0 // loop_footer
    %s18 = sadd.s32 1, %s14
  $region7: #{learning_padding_by_convolution.1} parent=0 // loop_footer_branch
    %13 = sbr.rel target = $region3
  $region8: #{learning_padding_by_convolution.1} parent=0 // loop_exit
    _

</llo_original>
